<compile_context>
chip_gen: v7x
topology: tpu7x:2x2x1
jax: 0.10.0
libtpu: 0.0.40
codegen_flags: <defaults>
</compile_context>

<pallas_src>
import jax
import jax.numpy as jnp
import numpy as np
from jax import lax
from jax.experimental import pallas as pl
from jax.experimental.pallas import tpu as pltpu

LANE = 128        # lane-dense scalar output slab width
_BIG = 1e30       # finite sentinel (avoids inf-inf NaN risk); >> any real sq. distance


def _round_up(x, m):
    return ((x + m - 1) // m) * m


def _make_kernel(n_d, TI, TJ, N1, N2, n_i, n_j):
    """Kernel closure over static tile / true-size constants."""

    def kernel(x_ref, yt_ref, rx_ref, ry_ref, out_ref, row_acc, col_acc, loss2_acc):
        i = pl.program_id(1)          # i-tile index (over preds points)
        j = pl.program_id(2)          # j-tile index (over gts points)

        x = x_ref[0].astype(jnp.float32)     # (TI, D)  D tiny, on lanes
        yt = yt_ref[0].astype(jnp.float32)   # (D, TJ)  TJ lane-dense
        rx = rx_ref[0]                       # (TI, 1)  ||x_i||^2 (padded rows = BIG)
        ry = ry_ref[0]                       # (1, TJ)  ||y_j||^2 (padded cols = BIG)

        # zz[a,b] = x_a . y_b via D rank-1 broadcast FMAs on the VPU (no MXU,
        # no K=3 relayout traffic).
        zz = x[:, 0:1] * yt[0:1, :]
        for d in range(1, n_d):
            zz = zz + x[:, d:d + 1] * yt[d:d + 1, :]
        P = rx + ry - 2.0 * zz               # (TI, TJ) squared L2 (same formula as torch)

        # ---- loss1 path: running min over i for every j (elementwise VPU min) ----
        @pl.when(i == 0)
        def _():
            # Initialize; padded j lanes get -BIG so they can never win the final max_j.
            lane = lax.broadcasted_iota(jnp.int32, P.shape, 1) + j * TJ
            col_acc[j] = jnp.where(lane < N2, P, -_BIG)

        @pl.when(i != 0)
        def _():
            col_acc[j] = jnp.minimum(col_acc[j], P)

        # ---- loss2 path: running min over j for the current i tile ----
        @pl.when(j == 0)
        def _():
            row_acc[...] = P

        @pl.when(j != 0)
        def _():
            row_acc[...] = jnp.minimum(row_acc[...], P)

        # Fold the finished i tile into loss2 = max_i min_j P  (one XLU pass per i tile).
        @pl.when(j == n_j - 1)
        def _():
            rowmin = jnp.min(row_acc[...], axis=1, keepdims=True)          # (TI, 1)
            sub = lax.broadcasted_iota(jnp.int32, rowmin.shape, 0) + i * TI
            rowmin = jnp.where(sub < N1, rowmin, -_BIG)                    # mask pad i rows
            tile_max = jnp.max(rowmin, axis=0, keepdims=True)              # (1, 1)
            prev = jnp.where(i == 0, jnp.full((1, 1), -_BIG, jnp.float32), loss2_acc[...])
            loss2_acc[...] = jnp.maximum(prev, tile_max)

        # Epilogue (once per batch element): loss1 = max_j min_i P, combine, write.
        @pl.when(jnp.logical_and(i == n_i - 1, j == n_j - 1))
        def _():
            loss1 = jnp.full((1, 1), -_BIG, jnp.float32)
            for jt in range(n_j):                                          # static unroll
                cm = jnp.min(col_acc[jt], axis=0, keepdims=True)           # (1, TJ)
                loss1 = jnp.maximum(loss1, jnp.max(cm, axis=1, keepdims=True))
            hd = 0.5 * (loss1 + loss2_acc[...])                            # (1, 1)
            out_ref[0] = jnp.broadcast_to(hd, (1, out_ref.shape[-1])).astype(out_ref.dtype)

    return kernel


def hausdorff_distance(preds, gts, *, tile_i=128, tile_j=512):
    """preds: [B, N1, D] f32, gts: [B, N2, D] f32  ->  hd: [B] f32"""
    B, N1, D = preds.shape
    Bg, N2, Dg = gts.shape
    assert B == Bg and D == Dg, "batch / point-dim mismatch"

    preds = preds.astype(jnp.float32)
    gts = gts.astype(jnp.float32)

    TI = min(tile_i, _round_up(N1, 8))       # sublane tile (multiple of 8)
    TJ = min(tile_j, _round_up(N2, LANE))    # lane tile (multiple of 128)
    N1p = _round_up(N1, TI)
    N2p = _round_up(N2, TJ)
    n_i = N1p // TI
    n_j = N2p // TJ

    # Squared norms outside the kernel (O(N) work, fused by XLA); sentinel padding.
    rx = jnp.sum(preds * preds, axis=2, keepdims=True)            # (B, N1, 1)
    ry = jnp.sum(gts * gts, axis=2)[:, None, :]                   # (B, 1, N2)

    preds_p = jnp.pad(preds, ((0, 0), (0, N1p - N1), (0, 0)))                    # coords -> 0
    gts_t_p = jnp.pad(jnp.swapaxes(gts, 1, 2), ((0, 0), (0, 0), (0, N2p - N2)))  # (B, D, N2p)
    rx_p = jnp.pad(rx, ((0, 0), (0, N1p - N1), (0, 0)), constant_values=_BIG)
    ry_p = jnp.pad(ry, ((0, 0), (0, 0), (0, N2p - N2)), constant_values=_BIG)

    kernel = _make_kernel(D, TI, TJ, N1, N2, n_i, n_j)

    # Advisory cost estimate for XLA's scheduler.
    flops = 2 * B * n_i * n_j * TI * TJ * (D + 3)
    bytes_accessed = 4 * B * (n_j * N1p * (D + 1) + n_i * N2p * (D + 1) + LANE)

    # Explicit scoped-VMEM limit (v5e default is only 16 MiB); clamp to v7x's 64 MiB.
    vmem_need = 4 * (2 * (TI * D + D * TJ + TI + TJ)   # double-buffered input tiles
                     + 3 * TI * TJ                     # P temp + row accumulator headroom
                     + n_j * TI * TJ                   # col accumulator
                     + 2 * LANE)
    vmem_limit = int(min(max(2 * vmem_need, 32 * 1024 * 1024), 64 * 1024 * 1024))

    out = pl.pallas_call(
        kernel,
        out_shape=jax.ShapeDtypeStruct((B, 1, LANE), jnp.float32),
        grid_spec=pltpu.PrefetchScalarGridSpec(
            num_scalar_prefetch=0,
            grid=(B, n_i, n_j),                        # batch first, reduction axes last
            in_specs=[
                pl.BlockSpec((1, TI, D), lambda b, i, j: (b, i, 0)),   # preds tile
                pl.BlockSpec((1, D, TJ), lambda b, i, j: (b, 0, j)),   # gts^T tile (lane-dense)
                pl.BlockSpec((1, TI, 1), lambda b, i, j: (b, i, 0)),   # ||x||^2 column
                pl.BlockSpec((1, 1, TJ), lambda b, i, j: (b, 0, j)),   # ||y||^2 row
            ],
            out_specs=pl.BlockSpec((1, 1, LANE), lambda b, i, j: (b, 0, 0)),
            scratch_shapes=[
                pltpu.VMEM((TI, TJ), jnp.float32),       # row running-min (current i tile)
                pltpu.VMEM((n_j, TI, TJ), jnp.float32),  # col running-min (all j tiles)
                pltpu.VMEM((1, 1), jnp.float32),         # loss2 running max
            ],
        ),
        compiler_params=pltpu.CompilerParams(
            dimension_semantics=("parallel", "arbitrary", "arbitrary"),
            vmem_limit_bytes=vmem_limit,
        ),
        cost_estimate=pl.CostEstimate(
            flops=int(flops), transcendentals=0, bytes_accessed=int(bytes_accessed)),
    )(preds_p, gts_t_p, rx_p, ry_p)
    return out[:, 0, 0]  # [B]


def _hausdorff_ref(preds, gts):
    # Pure-JAX reference mirroring the torch code.
    zz = jnp.einsum("bnd,bmd->bnm", preds, gts, precision=lax.Precision.HIGHEST)
    rx = jnp.sum(preds * preds, axis=2)[:, :, None]
    ry = jnp.sum(gts * gts, axis=2)[:, None, :]
    P = rx + ry - 2.0 * zz
    loss1 = jnp.max(jnp.min(P, axis=1), axis=1)
    loss2 = jnp.max(jnp.min(P, axis=2), axis=1)
    return (loss1 + loss2) / 2.0


# TODO(synk): the torch module's host-side batch_size chunking + tqdm progress bar is a
# driver-loop concern, not a kernel op; the Pallas grid's batch axis covers it.

if __name__ == "__main__":
    key = jax.random.PRNGKey(0)
    k1, k2, k3, k4 = jax.random.split(key, 4)

    # Case 1: small, single-tile-per-axis path.
    B, N1, N2, D = 2, 64, 48, 3
    preds = jax.random.normal(k1, (B, N1, D), dtype=jnp.float32)
    gts = jax.random.normal(k2, (B, N2, D), dtype=jnp.float32)
    hd = jax.block_until_ready(hausdorff_distance(preds, gts))
    hd_ref = _hausdorff_ref(preds, gts)
    assert hd.shape == (B,)
    np.testing.assert_allclose(np.asarray(hd), np.asarray(hd_ref), rtol=1e-5, atol=1e-5)

    # Case 2: multi-tile path with partial tiles on both axes (exercises the
    # running-min accumulators, reduction grid axes, and the padding masks).
    B, N1, N2, D = 2, 200, 300, 3
    preds = jax.random.normal(k3, (B, N1, D), dtype=jnp.float32)
    gts = jax.random.normal(k4, (B, N2, D), dtype=jnp.float32)
    hd = jax.block_until_ready(hausdorff_distance(preds, gts, tile_i=64, tile_j=128))
    hd_ref = _hausdorff_ref(preds, gts)
    np.testing.assert_allclose(np.asarray(hd), np.asarray(hd_ref), rtol=1e-5, atol=1e-5)

    print("KERNEL_OK")
</pallas_src>

<mosaic_0001>
module attributes {stable_mosaic.version = 11 : i64} {
  func.func @kernel(%arg0: i32, %arg1: i32, %arg2: i32, %arg3: memref<1x64x3xf32, #tpu.memory_space<vmem>>, %arg4: memref<1x3x128xf32, #tpu.memory_space<vmem>>, %arg5: memref<1x64x1xf32, #tpu.memory_space<vmem>>, %arg6: memref<1x1x128xf32, #tpu.memory_space<vmem>>, %arg7: memref<1x1x128xf32, #tpu.memory_space<vmem>>, %arg8: memref<64x128xf32, #tpu.memory_space<vmem>>, %arg9: memref<1x64x128xf32, #tpu.memory_space<vmem>>, %arg10: memref<1x1xf32, #tpu.memory_space<vmem>>) attributes {dimension_semantics = [#tpu.dimension_semantics<parallel>, #tpu.dimension_semantics<arbitrary>, #tpu.dimension_semantics<arbitrary>], iteration_bounds = array<i64: 2, 1, 1>, scalar_prefetch = 0 : i64, scratch_operands = 3 : i64, tpu.core_type = #tpu.core_type<tc>, window_params = [{transform_indices = @transform_0, window_bounds = array<i64: 1, 64, 3>}, {transform_indices = @transform_1, window_bounds = array<i64: 1, 3, 128>}, {transform_indices = @transform_2, window_bounds = array<i64: 1, 64, 1>}, {transform_indices = @transform_3, window_bounds = array<i64: 1, 1, 128>}, {transform_indices = @transform_4, window_bounds = array<i64: 1, 1, 128>}]} {
    %c0 = arith.constant 0 : index
    %c0_0 = arith.constant 0 : index
    %c0_1 = arith.constant 0 : index
    %0 = vector.load %arg3[%c0, %c0_0, %c0_1] : memref<1x64x3xf32, #tpu.memory_space<vmem>>, vector<1x64x3xf32>
    %1 = vector.shape_cast %0 : vector<1x64x3xf32> to vector<64x3xf32>
    %c0_2 = arith.constant 0 : index
    %c0_3 = arith.constant 0 : index
    %c0_4 = arith.constant 0 : index
    %2 = vector.load %arg4[%c0_2, %c0_3, %c0_4] : memref<1x3x128xf32, #tpu.memory_space<vmem>>, vector<1x3x128xf32>
    %3 = vector.shape_cast %2 : vector<1x3x128xf32> to vector<3x128xf32>
    %c0_5 = arith.constant 0 : index
    %c0_6 = arith.constant 0 : index
    %c0_7 = arith.constant 0 : index
    %4 = vector.load %arg5[%c0_5, %c0_6, %c0_7] : memref<1x64x1xf32, #tpu.memory_space<vmem>>, vector<1x64x1xf32>
    %5 = vector.shape_cast %4 : vector<1x64x1xf32> to vector<64x1xf32>
    %c0_8 = arith.constant 0 : index
    %c0_9 = arith.constant 0 : index
    %c0_10 = arith.constant 0 : index
    %6 = vector.load %arg6[%c0_8, %c0_9, %c0_10] : memref<1x1x128xf32, #tpu.memory_space<vmem>>, vector<1x1x128xf32>
    %7 = vector.shape_cast %6 : vector<1x1x128xf32> to vector<1x128xf32>
    %8 = vector.extract_strided_slice %1 {offsets = [0, 0], sizes = [64, 1], strides = [1, 1]} : vector<64x3xf32> to vector<64x1xf32>
    %9 = vector.extract_strided_slice %3 {offsets = [0, 0], sizes = [1, 128], strides = [1, 1]} : vector<3x128xf32> to vector<1x128xf32>
    %10 = vector.broadcast %8 : vector<64x1xf32> to vector<64x128xf32>
    %11 = vector.broadcast %9 : vector<1x128xf32> to vector<64x128xf32>
    %12 = arith.mulf %10, %11 : vector<64x128xf32>
    %13 = vector.extract_strided_slice %1 {offsets = [0, 1], sizes = [64, 1], strides = [1, 1]} : vector<64x3xf32> to vector<64x1xf32>
    %14 = vector.extract_strided_slice %3 {offsets = [1, 0], sizes = [1, 128], strides = [1, 1]} : vector<3x128xf32> to vector<1x128xf32>
    %15 = vector.broadcast %13 : vector<64x1xf32> to vector<64x128xf32>
    %16 = vector.broadcast %14 : vector<1x128xf32> to vector<64x128xf32>
    %17 = arith.mulf %15, %16 : vector<64x128xf32>
    %18 = arith.addf %12, %17 : vector<64x128xf32>
    %19 = vector.extract_strided_slice %1 {offsets = [0, 2], sizes = [64, 1], strides = [1, 1]} : vector<64x3xf32> to vector<64x1xf32>
    %20 = vector.extract_strided_slice %3 {offsets = [2, 0], sizes = [1, 128], strides = [1, 1]} : vector<3x128xf32> to vector<1x128xf32>
    %21 = vector.broadcast %19 : vector<64x1xf32> to vector<64x128xf32>
    %22 = vector.broadcast %20 : vector<1x128xf32> to vector<64x128xf32>
    %23 = arith.mulf %21, %22 : vector<64x128xf32>
    %24 = arith.addf %18, %23 : vector<64x128xf32>
    %25 = vector.broadcast %5 : vector<64x1xf32> to vector<64x128xf32>
    %26 = vector.broadcast %7 : vector<1x128xf32> to vector<64x128xf32>
    %27 = arith.addf %25, %26 : vector<64x128xf32>
    %cst = arith.constant 2.000000e+00 : f32
    %28 = vector.broadcast %cst : f32 to vector<64x128xf32>
    %29 = arith.mulf %28, %24 : vector<64x128xf32>
    %30 = arith.subf %27, %29 : vector<64x128xf32>
    %c0_i32 = arith.constant 0 : i32
    %31 = arith.cmpi eq, %arg1, %c0_i32 : i32
    %32 = arith.extui %31 : i1 to i32
    %c0_i32_11 = arith.constant 0 : i32
    %33 = arith.cmpi ne, %32, %c0_i32_11 : i32
    scf.if %33 {
      %51 = tpu.iota {dimensions = array<i32: 1>} : vector<64x128xi32>
      %c128_i32 = arith.constant 128 : i32
      %52 = arith.muli %arg2, %c128_i32 : i32
      %53 = vector.broadcast %52 : i32 to vector<64x128xi32>
      %54 = arith.addi %51, %53 : vector<64x128xi32>
      %c48_i32 = arith.constant 48 : i32
      %55 = vector.broadcast %c48_i32 : i32 to vector<64x128xi32>
      %56 = arith.cmpi slt, %54, %55 : vector<64x128xi32>
      %cst_23 = arith.constant -1.000000e+30 : f32
      %57 = vector.broadcast %cst_23 : f32 to vector<64x128xf32>
      %58 = arith.select %56, %30, %57 : vector<64x128xi1>, vector<64x128xf32>
      %59 = arith.index_cast %arg2 : i32 to index
      %c0_24 = arith.constant 0 : index
      %c0_25 = arith.constant 0 : index
      %60 = vector.load %arg9[%59, %c0_24, %c0_25] : memref<1x64x128xf32, #tpu.memory_space<vmem>>, vector<1x64x128xf32>
      %61 = vector.shape_cast %60 : vector<1x64x128xf32> to vector<64x128xf32>
      %62 = vector.shape_cast %58 : vector<64x128xf32> to vector<1x64x128xf32>
      tpu.vector_store %arg9[%59, %c0_24, %c0_25], %62 {strides = array<i32>} : memref<1x64x128xf32, #tpu.memory_space<vmem>>, vector<1x64x128xf32>,
    } else {
    }
    %c0_i32_12 = arith.constant 0 : i32
    %34 = arith.cmpi ne, %arg1, %c0_i32_12 : i32
    %35 = arith.extui %34 : i1 to i32
    %c0_i32_13 = arith.constant 0 : i32
    %36 = arith.cmpi ne, %35, %c0_i32_13 : i32
    scf.if %36 {
      %51 = arith.index_cast %arg2 : i32 to index
      %c0_23 = arith.constant 0 : index
      %c0_24 = arith.constant 0 : index
      %52 = vector.load %arg9[%51, %c0_23, %c0_24] : memref<1x64x128xf32, #tpu.memory_space<vmem>>, vector<1x64x128xf32>
      %53 = vector.shape_cast %52 : vector<1x64x128xf32> to vector<64x128xf32>
      %54 = arith.minimumf %53, %30 : vector<64x128xf32>
      %55 = arith.index_cast %arg2 : i32 to index
      %c0_25 = arith.constant 0 : index
      %c0_26 = arith.constant 0 : index
      %56 = vector.load %arg9[%55, %c0_25, %c0_26] : memref<1x64x128xf32, #tpu.memory_space<vmem>>, vector<1x64x128xf32>
      %57 = vector.shape_cast %56 : vector<1x64x128xf32> to vector<64x128xf32>
      %58 = vector.shape_cast %54 : vector<64x128xf32> to vector<1x64x128xf32>
      tpu.vector_store %arg9[%55, %c0_25, %c0_26], %58 {strides = array<i32>} : memref<1x64x128xf32, #tpu.memory_space<vmem>>, vector<1x64x128xf32>,
    } else {
    }
    %c0_i32_14 = arith.constant 0 : i32
    %37 = arith.cmpi eq, %arg2, %c0_i32_14 : i32
    %38 = arith.extui %37 : i1 to i32
    %c0_i32_15 = arith.constant 0 : i32
    %39 = arith.cmpi ne, %38, %c0_i32_15 : i32
    scf.if %39 {
      %c0_23 = arith.constant 0 : index
      %c0_24 = arith.constant 0 : index
      %51 = vector.load %arg8[%c0_23, %c0_24] : memref<64x128xf32, #tpu.memory_space<vmem>>, vector<64x128xf32>
      tpu.vector_store %arg8[%c0_23, %c0_24], %30 {strides = array<i32>} : memref<64x128xf32, #tpu.memory_space<vmem>>, vector<64x128xf32>,
    } else {
    }
    %c0_i32_16 = arith.constant 0 : i32
    %40 = arith.cmpi ne, %arg2, %c0_i32_16 : i32
    %41 = arith.extui %40 : i1 to i32
    %c0_i32_17 = arith.constant 0 : i32
    %42 = arith.cmpi ne, %41, %c0_i32_17 : i32
    scf.if %42 {
      %c0_23 = arith.constant 0 : index
      %c0_24 = arith.constant 0 : index
      %51 = vector.load %arg8[%c0_23, %c0_24] : memref<64x128xf32, #tpu.memory_space<vmem>>, vector<64x128xf32>
      %52 = arith.minimumf %51, %30 : vector<64x128xf32>
      %c0_25 = arith.constant 0 : index
      %c0_26 = arith.constant 0 : index
      %53 = vector.load %arg8[%c0_25, %c0_26] : memref<64x128xf32, #tpu.memory_space<vmem>>, vector<64x128xf32>
      tpu.vector_store %arg8[%c0_25, %c0_26], %52 {strides = array<i32>} : memref<64x128xf32, #tpu.memory_space<vmem>>, vector<64x128xf32>,
    } else {
    }
    %c0_i32_18 = arith.constant 0 : i32
    %43 = arith.cmpi eq, %arg2, %c0_i32_18 : i32
    %44 = arith.extui %43 : i1 to i32
    %c0_i32_19 = arith.constant 0 : i32
    %45 = arith.cmpi ne, %44, %c0_i32_19 : i32
    scf.if %45 {
      %c0_23 = arith.constant 0 : index
      %c0_24 = arith.constant 0 : index
      %51 = vector.load %arg8[%c0_23, %c0_24] : memref<64x128xf32, #tpu.memory_space<vmem>>, vector<64x128xf32>
      %cst_25 = arith.constant dense<0x7F800000> : vector<64xf32>
      %52 = vector.multi_reduction <minimumf>, %51, %cst_25 [1] : vector<64x128xf32> to vector<64xf32>
      %53 = vector.shape_cast %52 : vector<64xf32> to vector<64x1xf32>
      %54 = tpu.iota {dimensions = array<i32: 0>} : vector<64x1xi32>
      %c64_i32 = arith.constant 64 : i32
      %55 = arith.muli %arg1, %c64_i32 : i32
      %56 = vector.broadcast %55 : i32 to vector<64x1xi32>
      %57 = arith.addi %54, %56 : vector<64x1xi32>
      %c64_i32_26 = arith.constant 64 : i32
      %58 = vector.broadcast %c64_i32_26 : i32 to vector<64x1xi32>
      %59 = arith.cmpi slt, %57, %58 : vector<64x1xi32>
      %cst_27 = arith.constant -1.000000e+30 : f32
      %60 = vector.broadcast %cst_27 : f32 to vector<64x1xf32>
      %61 = arith.select %59, %53, %60 : vector<64x1xi1>, vector<64x1xf32>
      %cst_28 = arith.constant dense<0xFF800000> : vector<1xf32>
      %62 = vector.multi_reduction <maximumf>, %61, %cst_28 [0] : vector<64x1xf32> to vector<1xf32>
      %63 = vector.shape_cast %62 : vector<1xf32> to vector<1x1xf32>
      %c0_i32_29 = arith.constant 0 : i32
      %64 = arith.cmpi eq, %arg1, %c0_i32_29 : i32
      %cst_30 = arith.constant -1.000000e+30 : f32
      %65 = vector.broadcast %cst_30 : f32 to vector<1x1xf32>
      %c0_31 = arith.constant 0 : index
      %c0_32 = arith.constant 0 : index
      %66 = vector.load %arg10[%c0_31, %c0_32] : memref<1x1xf32, #tpu.memory_space<vmem>>, vector<1x1xf32>
      %67 = arith.select %64, %65, %66 : vector<1x1xf32>
      %68 = arith.maximumf %67, %63 : vector<1x1xf32>
      %c0_33 = arith.constant 0 : index
      %c0_34 = arith.constant 0 : index
      %69 = vector.load %arg10[%c0_33, %c0_34] : memref<1x1xf32, #tpu.memory_space<vmem>>, vector<1x1xf32>
      tpu.vector_store %arg10[%c0_33, %c0_34], %68 {strides = array<i32>} : memref<1x1xf32, #tpu.memory_space<vmem>>, vector<1x1xf32>,
    } else {
    }
    %c0_i32_20 = arith.constant 0 : i32
    %46 = arith.cmpi eq, %arg1, %c0_i32_20 : i32
    %c0_i32_21 = arith.constant 0 : i32
    %47 = arith.cmpi eq, %arg2, %c0_i32_21 : i32
    %48 = arith.andi %46, %47 : i1
    %49 = arith.extui %48 : i1 to i32
    %c0_i32_22 = arith.constant 0 : i32
    %50 = arith.cmpi ne, %49, %c0_i32_22 : i32
    scf.if %50 {
      %cst_23 = arith.constant -1.000000e+30 : f32
      %51 = vector.broadcast %cst_23 : f32 to vector<1x1xf32>
      %c0_24 = arith.constant 0 : index
      %c0_25 = arith.constant 0 : index
      %c0_26 = arith.constant 0 : index
      %52 = vector.load %arg9[%c0_24, %c0_25, %c0_26] : memref<1x64x128xf32, #tpu.memory_space<vmem>>, vector<1x64x128xf32>
      %53 = vector.shape_cast %52 : vector<1x64x128xf32> to vector<64x128xf32>
      %cst_27 = arith.constant dense<0x7F800000> : vector<128xf32>
      %54 = vector.multi_reduction <minimumf>, %53, %cst_27 [0] : vector<64x128xf32> to vector<128xf32>
      %55 = vector.shape_cast %54 : vector<128xf32> to vector<1x128xf32>
      %cst_28 = arith.constant dense<0xFF800000> : vector<1xf32>
      %56 = vector.multi_reduction <maximumf>, %55, %cst_28 [1] : vector<1x128xf32> to vector<1xf32>
      %57 = vector.shape_cast %56 : vector<1xf32> to vector<1x1xf32>
      %58 = arith.maximumf %51, %57 : vector<1x1xf32>
      %c0_29 = arith.constant 0 : index
      %c0_30 = arith.constant 0 : index
      %59 = vector.load %arg10[%c0_29, %c0_30] : memref<1x1xf32, #tpu.memory_space<vmem>>, vector<1x1xf32>
      %60 = arith.addf %58, %59 : vector<1x1xf32>
      %cst_31 = arith.constant 5.000000e-01 : f32
      %61 = vector.broadcast %cst_31 : f32 to vector<1x1xf32>
      %62 = arith.mulf %61, %60 : vector<1x1xf32>
      %63 = vector.shape_cast %62 : vector<1x1xf32> to vector<1x1xf32>
      %64 = vector.broadcast %63 : vector<1x1xf32> to vector<1x128xf32>
      %c0_32 = arith.constant 0 : index
      %c0_33 = arith.constant 0 : index
      %c0_34 = arith.constant 0 : index
      %65 = vector.load %arg7[%c0_32, %c0_33, %c0_34] : memref<1x1x128xf32, #tpu.memory_space<vmem>>, vector<1x1x128xf32>
      %66 = vector.shape_cast %65 : vector<1x1x128xf32> to vector<1x128xf32>
      %67 = vector.shape_cast %64 : vector<1x128xf32> to vector<1x1x128xf32>
      tpu.vector_store %arg7[%c0_32, %c0_33, %c0_34], %67 {strides = array<i32>} : memref<1x1x128xf32, #tpu.memory_space<vmem>>, vector<1x1x128xf32>,
    } else {
    }
    return
  }
  func.func @transform_0(%arg0: i32, %arg1: i32, %arg2: i32) -> (i32, i32, i32) {
    %c0_i32 = arith.constant 0 : i32
    %c0_i32_0 = arith.constant 0 : i32
    return %arg0, %arg1, %c0_i32 : i32, i32, i32
  }
  func.func @transform_1(%arg0: i32, %arg1: i32, %arg2: i32) -> (i32, i32, i32) {
    %c0_i32 = arith.constant 0 : i32
    %c0_i32_0 = arith.constant 0 : i32
    return %arg0, %c0_i32, %arg2 : i32, i32, i32
  }
  func.func @transform_2(%arg0: i32, %arg1: i32, %arg2: i32) -> (i32, i32, i32) {
    %c0_i32 = arith.constant 0 : i32
    %c0_i32_0 = arith.constant 0 : i32
    return %arg0, %arg1, %c0_i32 : i32, i32, i32
  }
  func.func @transform_3(%arg0: i32, %arg1: i32, %arg2: i32) -> (i32, i32, i32) {
    %c0_i32 = arith.constant 0 : i32
    %c0_i32_0 = arith.constant 0 : i32
    return %arg0, %c0_i32, %arg2 : i32, i32, i32
  }
  func.func @transform_4(%arg0: i32, %arg1: i32, %arg2: i32) -> (i32, i32, i32) {
    %c0_i32 = arith.constant 0 : i32
    %c0_i32_0 = arith.constant 0 : i32
    %c0_i32_1 = arith.constant 0 : i32
    return %arg0, %c0_i32, %c0_i32_0 : i32, i32, i32
  }
}

</mosaic_0001>

<llo_original>
// kernel: tpu_custom_call.1
$region0: #{tpu_custom_call.1}
  #allocation0 [shape = 'u32[]', space=smem, size = 0x4, offset = 0x4, fixed_abs, tag = 'smem constant byte address 0x4 - core index']
  #allocation1 [shape = 'u32[144,128]{1,0:T(1,128)}', space=vmem, size = 0x12000, scoped, tag = 'internal scratch']
  #allocation2 [shape = 'f32[64,128]{1,0:T(8,128)}', space=vmem, size = 0x8000, scoped, tag = 'scratch operand']
  #allocation3 [shape = 'f32[1,64,128]{2,1,0:T(8,128)}', space=vmem, size = 0x8000, scoped, tag = 'scratch operand']
  #allocation4 [shape = 'f32[1,1]{1,0:T(1,128)}', space=vmem, size = 0x200, scoped, tag = 'scratch operand']
  %s0 = inlined_call_operand.vmem [shape: f32[2,64,3], index: 0, kind: input, shape index: {}]
  %s1 = inlined_call_operand.vmem [shape: f32[2,3,128], index: 1, kind: input, shape index: {}]
  %s2 = inlined_call_operand.vmem [shape: f32[2,64,1], index: 2, kind: input, shape index: {}]
  %s3 = inlined_call_operand.vmem [shape: f32[2,1,128], index: 3, kind: input, shape index: {}]
  %s4 = inlined_call_operand.hbm [shape: f32[2,1,128], index: 4, kind: output, shape index: {}]
  %s5 = sld [smem:[#allocation0]]
  $region73: #{tpu_custom_call.1} parent=0
    _
  %s7 = ssub.s32 1, %s5
  %s8 = scalar_select 0, %s7, %s5
  $region1: #{tpu_custom_call.1} parent=0
    #allocation5 [shape = 'u8[1024]{0}', space=vmem, size = 0x400, scoped, tag = 'output window, operand 0']
    #allocation6 [shape = 's32[2]{0}', space=sflag, size = 0x8, scoped, tag = 'scoped memory for tpu_custom_call.1']
    %9 = vsyncpa [#allocation6], 0
    %s10 = scalar_lea.sflag [#allocation6], 1
    %11 = vsyncpa %s10, 0
    loop: start=0, step=1, limit=4
    $region2: #{tpu_custom_call.1} parent=1 // loop_pre_header
      _
    $region3: #{tpu_custom_call.1} parent=1 // loop_header
      %s13 = sphi 0, %s17
      %p14 = scmp.ge.s32.totalorder %s13, 4
      %s20 = sphi 0, %s39
      %s21 = sphi 0, %s35
      %s22 = sphi 0, %s31
      %s23 = sphi 0, %s20
      %s24 = sphi 0, %s21
      %s25 = sphi 0, %s22
      %s26 = sphi 0, %s23
      %s27 = sphi 0, %s24
      %s28 = sphi 0, %s25
      %s44 = sphi 0, %s46
      %s47 = sphi 0, %s44
      %s48 = sphi 0, %s47
      %s64 = sphi 0, %s48
      %s72 = sphi 0, %s74
      %s75 = sphi 0, %s72
      %s76 = sphi 0, %s75
      %s92 = sphi 0, %s76
      %s100 = sphi 0, %s102
      %s103 = sphi 0, %s100
      %s104 = sphi 0, %s103
      %s120 = sphi 0, %s104
      %s128 = sphi 0, %s130
      %s131 = sphi 0, %s128
      %s132 = sphi 0, %s131
      %s148 = sphi 0, %s132
      %s154 = sphi 0, %s156
      %s157 = sphi 0, %s154
      %s158 = sphi 0, %s157
      %s174 = sphi 0, %s158
    $region4: #{tpu_custom_call.1} parent=1 // loop_header_branch
      %16 = sbr.rel (%p14) target = $region8
    $region5: #{tpu_custom_call.1} parent=1 // loop_body
      %s18 = ssub.s32 %s13, 1
      %s19 = ssub.s32 %s13, 2
      %s29 = sadd.s32 1, %s22
      %p30 = scmp.ge.s32.totalorder %s29, 1
      %s31 = scalar_select %p30, 0, %s29
      %s32 = sadd.s32 1, %s21
      %s33 = scalar_select %p30, %s32, %s21
      %p34 = scmp.ge.s32.totalorder %s33, 1
      %s35 = scalar_select %p34, 0, %s33
      %s36 = sadd.s32 1, %s20
      %s37 = scalar_select %p34, %s36, %s20
      %p38 = scmp.ge.s32.totalorder %s37, 2
      %s39 = scalar_select %p38, 0, %s37
      %s40 = ssub.s32 %s20, %s39
      %s41 = ssub.s32 %s21, %s35
      %s42 = sor.u32 %s40, %s41
      %p43 = scmp.eq.s32.totalorder %s42, 0
      %s45 = sadd.s32 %s44, 1
      %s46 = scalar_select %p43, %s44, %s45
      %p49 = pneg %p43
      %p50 = scmp.eq.s32.totalorder %s13, 1
      %p51 = por %p49, %p50
      %p52 = scmp.ne.s32.totalorder %s44, %s47
      %p53 = scmp.eq.s32.totalorder %s13, 0
      %p54 = por %p52, %p53
      %p55 = scmp.ne.s32.totalorder %s44, %s47
      %p56 = scmp.eq.s32.totalorder %s18, 1
      %p57 = por %p55, %p56
      %p58 = scmp.ne.s32.totalorder %s47, %s48
      %p59 = scmp.eq.s32.totalorder %s18, 0
      %p60 = por %p58, %p59
      %p61 = scmp.ne.s32.totalorder %s47, %s48
      %p62 = scmp.eq.s32.totalorder %s19, 1
      %p63 = por %p61, %p62
      %p65 = scmp.ne.s32.totalorder %s48, %s64
      %p66 = scmp.eq.s32.totalorder %s19, 0
      %p67 = por %p65, %p66
      %s68 = ssub.s32 %s20, %s39
      %s69 = ssub.s32 %s22, %s31
      %s70 = sor.u32 %s68, %s69
      %p71 = scmp.eq.s32.totalorder %s70, 0
      %s73 = sadd.s32 %s72, 1
      %s74 = scalar_select %p71, %s72, %s73
      %p77 = pneg %p71
      %p78 = scmp.eq.s32.totalorder %s13, 1
      %p79 = por %p77, %p78
      %p80 = scmp.ne.s32.totalorder %s72, %s75
      %p81 = scmp.eq.s32.totalorder %s13, 0
      %p82 = por %p80, %p81
      %p83 = scmp.ne.s32.totalorder %s72, %s75
      %p84 = scmp.eq.s32.totalorder %s18, 1
      %p85 = por %p83, %p84
      %p86 = scmp.ne.s32.totalorder %s75, %s76
      %p87 = scmp.eq.s32.totalorder %s18, 0
      %p88 = por %p86, %p87
      %p89 = scmp.ne.s32.totalorder %s75, %s76
      %p90 = scmp.eq.s32.totalorder %s19, 1
      %p91 = por %p89, %p90
      %p93 = scmp.ne.s32.totalorder %s76, %s92
      %p94 = scmp.eq.s32.totalorder %s19, 0
      %p95 = por %p93, %p94
      %s96 = ssub.s32 %s20, %s39
      %s97 = ssub.s32 %s21, %s35
      %s98 = sor.u32 %s96, %s97
      %p99 = scmp.eq.s32.totalorder %s98, 0
      %s101 = sadd.s32 %s100, 1
      %s102 = scalar_select %p99, %s100, %s101
      %p105 = pneg %p99
      %p106 = scmp.eq.s32.totalorder %s13, 1
      %p107 = por %p105, %p106
      %p108 = scmp.ne.s32.totalorder %s100, %s103
      %p109 = scmp.eq.s32.totalorder %s13, 0
      %p110 = por %p108, %p109
      %p111 = scmp.ne.s32.totalorder %s100, %s103
      %p112 = scmp.eq.s32.totalorder %s18, 1
      %p113 = por %p111, %p112
      %p114 = scmp.ne.s32.totalorder %s103, %s104
      %p115 = scmp.eq.s32.totalorder %s18, 0
      %p116 = por %p114, %p115
      %p117 = scmp.ne.s32.totalorder %s103, %s104
      %p118 = scmp.eq.s32.totalorder %s19, 1
      %p119 = por %p117, %p118
      %p121 = scmp.ne.s32.totalorder %s104, %s120
      %p122 = scmp.eq.s32.totalorder %s19, 0
      %p123 = por %p121, %p122
      %s124 = ssub.s32 %s20, %s39
      %s125 = ssub.s32 %s22, %s31
      %s126 = sor.u32 %s124, %s125
      %p127 = scmp.eq.s32.totalorder %s126, 0
      %s129 = sadd.s32 %s128, 1
      %s130 = scalar_select %p127, %s128, %s129
      %p133 = pneg %p127
      %p134 = scmp.eq.s32.totalorder %s13, 1
      %p135 = por %p133, %p134
      %p136 = scmp.ne.s32.totalorder %s128, %s131
      %p137 = scmp.eq.s32.totalorder %s13, 0
      %p138 = por %p136, %p137
      %p139 = scmp.ne.s32.totalorder %s128, %s131
      %p140 = scmp.eq.s32.totalorder %s18, 1
      %p141 = por %p139, %p140
      %p142 = scmp.ne.s32.totalorder %s131, %s132
      %p143 = scmp.eq.s32.totalorder %s18, 0
      %p144 = por %p142, %p143
      %p145 = scmp.ne.s32.totalorder %s131, %s132
      %p146 = scmp.eq.s32.totalorder %s19, 1
      %p147 = por %p145, %p146
      %p149 = scmp.ne.s32.totalorder %s132, %s148
      %p150 = scmp.eq.s32.totalorder %s19, 0
      %p151 = por %p149, %p150
      %s152 = ssub.s32 %s20, %s39
      %p153 = scmp.eq.s32.totalorder %s152, 0
      %s155 = sadd.s32 %s154, 1
      %s156 = scalar_select %p153, %s154, %s155
      %p159 = pneg %p153
      %p160 = scmp.eq.s32.totalorder %s13, 1
      %p161 = por %p159, %p160
      %p162 = scmp.ne.s32.totalorder %s154, %s157
      %p163 = scmp.eq.s32.totalorder %s13, 0
      %p164 = por %p162, %p163
      %p165 = scmp.ne.s32.totalorder %s154, %s157
      %p166 = scmp.eq.s32.totalorder %s18, 1
      %p167 = por %p165, %p166
      %p168 = scmp.ne.s32.totalorder %s157, %s158
      %p169 = scmp.eq.s32.totalorder %s18, 0
      %p170 = por %p168, %p169
      %p171 = scmp.ne.s32.totalorder %s157, %s158
      %p172 = scmp.eq.s32.totalorder %s19, 1
      %p173 = por %p171, %p172
      %p175 = scmp.ne.s32.totalorder %s158, %s174
      %p176 = scmp.eq.s32.totalorder %s19, 0
      %p177 = por %p175, %p176
      %p178 = scmp.le.s32.totalorder 1, %s13
      %p179 = scmp.lt.s32.totalorder %s13, 3
      %p180 = pnand %p178, %p179
      %p181 = pneg %p180
      // Predicated region
      $region9: #{tpu_custom_call.1} parent=5 // pred_check
        _
      $region10: #{tpu_custom_call.1} parent=5 // pred_check_branch
        %183 = sbr.rel (%p180) target = $region12
      $region11: #{tpu_custom_call.1} parent=5 // pred_region
        %s184 = ssub.s32 %s13, 1
      $region12: #{tpu_custom_call.1} parent=5 // pred_fallthru
        _
      %p185 = scmp.lt.s32.totalorder %s13, 2
      // Predicated region
      $region13: #{tpu_custom_call.1} parent=5 // pred_check
        %p186 = pneg %p185
      $region14: #{tpu_custom_call.1} parent=5 // pred_check_branch
        %188 = sbr.rel (%p186) target = $region16
      $region15: #{tpu_custom_call.1} parent=5 // pred_region
        // Predicated region
        $region17: #{tpu_custom_call.1} parent=15 // pred_check
          %p189 = pneg %p54
        $region18: #{tpu_custom_call.1} parent=15 // pred_check_branch
          %191 = sbr.rel (%p189) target = $region20
        $region19: #{tpu_custom_call.1} parent=15 // pred_region
          %s192 = smul.u32 8, %s21
          %p193 = scmp.lt.s32.totalorder %s20, 1
          %s194 = scalar_select %p193, %s20, 1
          %p195 = scmp.lt.s32.totalorder %s192, 7
          %s196 = scalar_select %p195, %s192, 7
          %s197 = smul.addr %s194, 8
          %s198 = sadd.s32 %s196, %s197
          %s199 = smul.addr %s198, 8
          %s200 = scalar_lea.vmem %s0, %s199
          %s201 = smul.u32 8, %s21
        $region20: #{tpu_custom_call.1} parent=15 // pred_fallthru
          _
        // Predicated region
        $region21: #{tpu_custom_call.1} parent=15 // pred_check
          %p202 = pneg %p82
        $region22: #{tpu_custom_call.1} parent=15 // pred_check_branch
          %204 = sbr.rel (%p202) target = $region24
        $region23: #{tpu_custom_call.1} parent=15 // pred_region
          %p205 = scmp.lt.s32.totalorder %s20, 1
          %s206 = scalar_select %p205, %s20, 1
          %p207 = scmp.lt.s32.totalorder %s22, 0
          %s208 = scalar_select %p207, %s22, 0
          %s209 = sadd.s32 %s208, %s206
          %s210 = smul.addr %s209, 4
          %s211 = scalar_lea.vmem %s1, %s210
        $region24: #{tpu_custom_call.1} parent=15 // pred_fallthru
          _
        // Predicated region
        $region25: #{tpu_custom_call.1} parent=15 // pred_check
          %p212 = pneg %p110
        $region26: #{tpu_custom_call.1} parent=15 // pred_check_branch
          %214 = sbr.rel (%p212) target = $region28
        $region27: #{tpu_custom_call.1} parent=15 // pred_region
          %s215 = smul.u32 8, %s21
          %p216 = scmp.lt.s32.totalorder %s20, 1
          %s217 = scalar_select %p216, %s20, 1
          %p218 = scmp.lt.s32.totalorder %s215, 7
          %s219 = scalar_select %p218, %s215, 7
          %s220 = smul.addr %s217, 8
          %s221 = sadd.s32 %s219, %s220
          %s222 = smul.addr %s221, 8
          %s223 = scalar_lea.vmem %s2, %s222
          %s224 = smul.u32 8, %s21
        $region28: #{tpu_custom_call.1} parent=15 // pred_fallthru
          _
        // Predicated region
        $region29: #{tpu_custom_call.1} parent=15 // pred_check
          %p225 = pneg %p138
        $region30: #{tpu_custom_call.1} parent=15 // pred_check_branch
          %227 = sbr.rel (%p225) target = $region32
        $region31: #{tpu_custom_call.1} parent=15 // pred_region
          %p228 = scmp.lt.s32.totalorder %s20, 1
          %s229 = scalar_select %p228, %s20, 1
          %p230 = scmp.lt.s32.totalorder %s22, 0
          %s231 = scalar_select %p230, %s22, 0
          %s232 = sadd.s32 %s231, %s229
          %s233 = scalar_lea.vmem %s3, %s232
        $region32: #{tpu_custom_call.1} parent=15 // pred_fallthru
          _
      $region16: #{tpu_custom_call.1} parent=5 // pred_fallthru
        _
      %p234 = scmp.le.s32.totalorder 1, %s13
      %p235 = scmp.lt.s32.totalorder %s13, 3
      %p236 = pnand %p234, %p235
      %p237 = pneg %p236
      // Predicated region
      $region33: #{tpu_custom_call.1} parent=5 // pred_check
        _
      $region34: #{tpu_custom_call.1} parent=5 // pred_check_branch
        %239 = sbr.rel (%p236) target = $region36
      $region35: #{tpu_custom_call.1} parent=5 // pred_region
        %s240 = ssub.s32 %s13, 1
        %s241 = smul.u32 8, %s24
        %p242 = scmp.lt.s32.totalorder %s23, 1
        %s243 = scalar_select %p242, %s23, 1
        %p244 = scmp.lt.s32.totalorder %s241, 7
        %s245 = scalar_select %p244, %s241, 7
        %s246 = smul.addr %s243, 8
        %s247 = sadd.s32 %s245, %s246
        %s248 = smul.addr %s247, 8
        %s249 = scalar_lea.vmem %s0, %s248
        %p250 = pneg %p60
        %p251 = pneg %p57
        %p252 = scmp.lt.s32.totalorder %s23, 1
        %s253 = scalar_select %p252, %s23, 1
        %p254 = scmp.lt.s32.totalorder %s25, 0
        %s255 = scalar_select %p254, %s25, 0
        %s256 = sadd.s32 %s255, %s253
        %s257 = smul.addr %s256, 4
        %s258 = scalar_lea.vmem %s1, %s257
        %p259 = pneg %p88
        %p260 = pneg %p85
        %s261 = smul.u32 8, %s24
        %p262 = scmp.lt.s32.totalorder %s23, 1
        %s263 = scalar_select %p262, %s23, 1
        %p264 = scmp.lt.s32.totalorder %s261, 7
        %s265 = scalar_select %p264, %s261, 7
        %s266 = smul.addr %s263, 8
        %s267 = sadd.s32 %s265, %s266
        %s268 = smul.addr %s267, 8
        %s269 = scalar_lea.vmem %s2, %s268
        %p270 = pneg %p116
        %p271 = pneg %p113
        %p272 = scmp.lt.s32.totalorder %s23, 1
        %s273 = scalar_select %p272, %s23, 1
        %p274 = scmp.lt.s32.totalorder %s25, 0
        %s275 = scalar_select %p274, %s25, 0
        %s276 = sadd.s32 %s275, %s273
        %s277 = scalar_lea.vmem %s3, %s276
        %p278 = pneg %p144
        %p279 = pneg %p141
        %p280 = pneg %p170
        %p281 = pneg %p167
        %s282 = sand.u32 %s157, 1
        %s283 = scalar_lea.sflag [#allocation6], %s282
        %s284 = sand.u32 %s157, 1
        %s285 = scalar_lea.vmem [#allocation5], %s284
        %s286 = smul.u32 8, %s24
        %p287 = scmp.lt.s32.totalorder %s23, 1
        %s288 = scalar_select %p287, %s23, 1
        %p289 = scmp.lt.s32.totalorder %s286, 7
        %s290 = scalar_select %p289, %s286, 7
        %s291 = smul.addr %s288, 8
        %s292 = sadd.s32 %s290, %s291
        %s293 = smul.addr %s292, 8
        %s294 = scalar_lea.vmem %s0, %s293
        %s295 = smul.u32 8, %s24
        %p296 = scmp.lt.s32.totalorder %s23, 1
        %s297 = scalar_select %p296, %s23, 1
        %p298 = scmp.lt.s32.totalorder %s25, 0
        %s299 = scalar_select %p298, %s25, 0
        %s300 = sadd.s32 %s299, %s297
        %s301 = smul.addr %s300, 4
        %s302 = scalar_lea.vmem %s1, %s301
        %s303 = smul.u32 8, %s24
        %p304 = scmp.lt.s32.totalorder %s23, 1
        %s305 = scalar_select %p304, %s23, 1
        %p306 = scmp.lt.s32.totalorder %s303, 7
        %s307 = scalar_select %p306, %s303, 7
        %s308 = smul.addr %s305, 8
        %s309 = sadd.s32 %s307, %s308
        %s310 = smul.addr %s309, 8
        %s311 = scalar_lea.vmem %s2, %s310
        %s312 = smul.u32 8, %s24
        %p313 = scmp.lt.s32.totalorder %s23, 1
        %s314 = scalar_select %p313, %s23, 1
        %p315 = scmp.lt.s32.totalorder %s25, 0
        %s316 = scalar_select %p315, %s25, 0
        %s317 = sadd.s32 %s316, %s314
        %s318 = scalar_lea.vmem %s3, %s317
        %v319 = vld [vmem:[%s294] sm:$0xff]
        %v320 = vld [vmem:[%s294 + $0x8] sm:$0xff]
        %v321 = vld [vmem:[%s294 + $0x10] sm:$0xff]
        %v322 = vld [vmem:[%s294 + $0x18] sm:$0xff]
        %v323 = vld [vmem:[%s294 + $0x20] sm:$0xff]
        %v324 = vld [vmem:[%s294 + $0x28] sm:$0xff]
        %v325 = vld [vmem:[%s294 + $0x30] sm:$0xff]
        %v326 = vld [vmem:[%s294 + $0x38] sm:$0xff]
        %v327 = vld [vmem:[%s302] sm:$0x7]
        %v328 = vld [vmem:[%s311] sm:$0xff]
        %v329 = vld [vmem:[%s311 + $0x8] sm:$0xff]
        %v330 = vld [vmem:[%s311 + $0x10] sm:$0xff]
        %v331 = vld [vmem:[%s311 + $0x18] sm:$0xff]
        %v332 = vld [vmem:[%s311 + $0x20] sm:$0xff]
        %v333 = vld [vmem:[%s311 + $0x28] sm:$0xff]
        %v334 = vld [vmem:[%s311 + $0x30] sm:$0xff]
        %v335 = vld [vmem:[%s311 + $0x38] sm:$0xff]
        %v336 = vld [vmem:[%s318] sm:$0x1]
        %338 = vset.pattern.permute.xlu0 0
        %339 = vperm.xlu0 %338, %v319
        %v340 = vpop.permute.xlu0 %339
        %343 = vset.pattern.permute.xlu0 0
        %344 = vperm.xlu0 %343, %v320
        %v345 = vpop.permute.xlu0 %344
        %348 = vset.pattern.permute.xlu0 0
        %349 = vperm.xlu0 %348, %v321
        %v350 = vpop.permute.xlu0 %349
        %353 = vset.pattern.permute.xlu0 0
        %354 = vperm.xlu0 %353, %v322
        %v355 = vpop.permute.xlu0 %354
        %358 = vset.pattern.permute.xlu0 0
        %359 = vperm.xlu0 %358, %v323
        %v360 = vpop.permute.xlu0 %359
        %363 = vset.pattern.permute.xlu0 0
        %364 = vperm.xlu0 %363, %v324
        %v365 = vpop.permute.xlu0 %364
        %368 = vset.pattern.permute.xlu0 0
        %369 = vperm.xlu0 %368, %v325
        %v370 = vpop.permute.xlu0 %369
        %373 = vset.pattern.permute.xlu0 0
        %374 = vperm.xlu0 %373, %v326
        %v375 = vpop.permute.xlu0 %374
        %v377 = vlaneseq
        %v378 = vshrl.u32 %v377, 7
        %v379 = vsub.s32 0, %v378
        %v380 = vrot.slane %v327, %v379
        %v381 = vmul.f32 %v340, %v380
        %v382 = vmul.f32 %v345, %v380
        %v383 = vmul.f32 %v350, %v380
        %v384 = vmul.f32 %v355, %v380
        %v385 = vmul.f32 %v360, %v380
        %v386 = vmul.f32 %v365, %v380
        %v387 = vmul.f32 %v370, %v380
        %v388 = vmul.f32 %v375, %v380
        %389 = vset.pattern.permute.xlu0 1
        %390 = vperm.xlu0 %389, %v319
        %v391 = vpop.permute.xlu0 %390
        %393 = vset.pattern.permute.xlu0 1
        %394 = vperm.xlu0 %393, %v320
        %v395 = vpop.permute.xlu0 %394
        %397 = vset.pattern.permute.xlu0 1
        %398 = vperm.xlu0 %397, %v321
        %v399 = vpop.permute.xlu0 %398
        %401 = vset.pattern.permute.xlu0 1
        %402 = vperm.xlu0 %401, %v322
        %v403 = vpop.permute.xlu0 %402
        %405 = vset.pattern.permute.xlu0 1
        %406 = vperm.xlu0 %405, %v323
        %v407 = vpop.permute.xlu0 %406
        %409 = vset.pattern.permute.xlu0 1
        %410 = vperm.xlu0 %409, %v324
        %v411 = vpop.permute.xlu0 %410
        %413 = vset.pattern.permute.xlu0 1
        %414 = vperm.xlu0 %413, %v325
        %v415 = vpop.permute.xlu0 %414
        %417 = vset.pattern.permute.xlu0 1
        %418 = vperm.xlu0 %417, %v326
        %v419 = vpop.permute.xlu0 %418
        %v421 = vlaneseq
        %v422 = vshrl.u32 %v421, 7
        %v423 = vsub.s32 1, %v422
        %v424 = vrot.slane %v327, %v423
        %v425 = vmul.f32 %v391, %v424
        %v426 = vmul.f32 %v395, %v424
        %v427 = vmul.f32 %v399, %v424
        %v428 = vmul.f32 %v403, %v424
        %v429 = vmul.f32 %v407, %v424
        %v430 = vmul.f32 %v411, %v424
        %v431 = vmul.f32 %v415, %v424
        %v432 = vmul.f32 %v419, %v424
        %v433 = vadd.f32 %v381, %v425
        %v434 = vadd.f32 %v382, %v426
        %v435 = vadd.f32 %v383, %v427
        %v436 = vadd.f32 %v384, %v428
        %v437 = vadd.f32 %v385, %v429
        %v438 = vadd.f32 %v386, %v430
        %v439 = vadd.f32 %v387, %v431
        %v440 = vadd.f32 %v388, %v432
        %441 = vset.pattern.permute.xlu0 2
        %442 = vperm.xlu0 %441, %v319
        %v443 = vpop.permute.xlu0 %442
        %445 = vset.pattern.permute.xlu0 2
        %446 = vperm.xlu0 %445, %v320
        %v447 = vpop.permute.xlu0 %446
        %449 = vset.pattern.permute.xlu0 2
        %450 = vperm.xlu0 %449, %v321
        %v451 = vpop.permute.xlu0 %450
        %453 = vset.pattern.permute.xlu0 2
        %454 = vperm.xlu0 %453, %v322
        %v455 = vpop.permute.xlu0 %454
        %457 = vset.pattern.permute.xlu0 2
        %458 = vperm.xlu0 %457, %v323
        %v459 = vpop.permute.xlu0 %458
        %461 = vset.pattern.permute.xlu0 2
        %462 = vperm.xlu0 %461, %v324
        %v463 = vpop.permute.xlu0 %462
        %465 = vset.pattern.permute.xlu0 2
        %466 = vperm.xlu0 %465, %v325
        %v467 = vpop.permute.xlu0 %466
        %469 = vset.pattern.permute.xlu0 2
        %470 = vperm.xlu0 %469, %v326
        %v471 = vpop.permute.xlu0 %470
        %v473 = vlaneseq
        %v474 = vshrl.u32 %v473, 7
        %v475 = vsub.s32 2, %v474
        %v476 = vrot.slane %v327, %v475
        %v477 = vmul.f32 %v443, %v476
        %v478 = vmul.f32 %v447, %v476
        %v479 = vmul.f32 %v451, %v476
        %v480 = vmul.f32 %v455, %v476
        %v481 = vmul.f32 %v459, %v476
        %v482 = vmul.f32 %v463, %v476
        %v483 = vmul.f32 %v467, %v476
        %v484 = vmul.f32 %v471, %v476
        %v485 = vadd.f32 %v433, %v477
        %v486 = vadd.f32 %v434, %v478
        %v487 = vadd.f32 %v435, %v479
        %v488 = vadd.f32 %v436, %v480
        %v489 = vadd.f32 %v437, %v481
        %v490 = vadd.f32 %v438, %v482
        %v491 = vadd.f32 %v439, %v483
        %v492 = vadd.f32 %v440, %v484
        %494 = vset.pattern.permute.xlu0 0
        %495 = vperm.xlu0 %494, %v328
        %v496 = vpop.permute.xlu0 %495
        %499 = vset.pattern.permute.xlu0 0
        %500 = vperm.xlu0 %499, %v329
        %v501 = vpop.permute.xlu0 %500
        %504 = vset.pattern.permute.xlu0 0
        %505 = vperm.xlu0 %504, %v330
        %v506 = vpop.permute.xlu0 %505
        %509 = vset.pattern.permute.xlu0 0
        %510 = vperm.xlu0 %509, %v331
        %v511 = vpop.permute.xlu0 %510
        %514 = vset.pattern.permute.xlu0 0
        %515 = vperm.xlu0 %514, %v332
        %v516 = vpop.permute.xlu0 %515
        %519 = vset.pattern.permute.xlu0 0
        %520 = vperm.xlu0 %519, %v333
        %v521 = vpop.permute.xlu0 %520
        %524 = vset.pattern.permute.xlu0 0
        %525 = vperm.xlu0 %524, %v334
        %v526 = vpop.permute.xlu0 %525
        %529 = vset.pattern.permute.xlu0 0
        %530 = vperm.xlu0 %529, %v335
        %v531 = vpop.permute.xlu0 %530
        %v534 = vlaneseq
        %v535 = vshrl.u32 %v534, 7
        %v536 = vsub.s32 0, %v535
        %v537 = vrot.slane %v336, %v536
        %v539 = vadd.f32 %v496, %v537
        %v540 = vadd.f32 %v501, %v537
        %v541 = vadd.f32 %v506, %v537
        %v542 = vadd.f32 %v511, %v537
        %v543 = vadd.f32 %v516, %v537
        %v544 = vadd.f32 %v521, %v537
        %v545 = vadd.f32 %v526, %v537
        %v546 = vadd.f32 %v531, %v537
        %v547 = vmul.f32 %v485, 2.0
        %v548 = vmul.f32 %v486, 2.0
        %v549 = vmul.f32 %v487, 2.0
        %v550 = vmul.f32 %v488, 2.0
        %v551 = vmul.f32 %v489, 2.0
        %v552 = vmul.f32 %v490, 2.0
        %v553 = vmul.f32 %v491, 2.0
        %v554 = vmul.f32 %v492, 2.0
        %v555 = vsub.f32 %v539, %v547
        %v556 = vsub.f32 %v540, %v548
        %v557 = vsub.f32 %v541, %v549
        %v558 = vsub.f32 %v542, %v550
        %v559 = vsub.f32 %v543, %v551
        %v560 = vsub.f32 %v544, %v552
        %v561 = vsub.f32 %v545, %v553
        %v562 = vsub.f32 %v546, %v554
        %p563 = scmp.eq.s32.totalorder %s24, 0
        // Predicated region
        $region37: #{tpu_custom_call.1} parent=35 // pred_check
          %p564 = pneg %p563
        $region38: #{tpu_custom_call.1} parent=35 // pred_check_branch
          %566 = sbr.rel (%p564) target = $region40
        $region39: #{tpu_custom_call.1} parent=35 // pred_region
          %v567 = vlaneseq
          %v568 = vand.u32 %v567, 127
          %s569 = smul.u32 %s25, 128
          %v570 = vstv %s569
          %v571 = vadd.s32 %v568, %v570
          %vm572 = vcmp.lt.s32.totalorder %v571, 48
          %v573 = vsel %vm572, %v555, -1e+30
          %v574 = vsel %vm572, %v556, -1e+30
          %v575 = vsel %vm572, %v557, -1e+30
          %v576 = vsel %vm572, %v558, -1e+30
          %v577 = vsel %vm572, %v559, -1e+30
          %v578 = vsel %vm572, %v560, -1e+30
          %v579 = vsel %vm572, %v561, -1e+30
          %v580 = vsel %vm572, %v562, -1e+30
          %s581 = smul.u32 %s25, 64
          %s582 = scalar_lea.vmem [#allocation3], %s581
          %583 = vst [vmem:[%s582] sm:$0xff] %v573
          %584 = vst [vmem:[%s582 + $0x8] sm:$0xff] %v574
          %585 = vst [vmem:[%s582 + $0x10] sm:$0xff] %v575
          %586 = vst [vmem:[%s582 + $0x18] sm:$0xff] %v576
          %587 = vst [vmem:[%s582 + $0x20] sm:$0xff] %v577
          %588 = vst [vmem:[%s582 + $0x28] sm:$0xff] %v578
          %589 = vst [vmem:[%s582 + $0x30] sm:$0xff] %v579
          %590 = vst [vmem:[%s582 + $0x38] sm:$0xff] %v580
        $region40: #{tpu_custom_call.1} parent=35 // pred_fallthru
          _
        %p591 = scmp.ne.s32.totalorder %s24, 0
        // Predicated region
        $region41: #{tpu_custom_call.1} parent=35 // pred_check
          %p592 = pneg %p591
        $region42: #{tpu_custom_call.1} parent=35 // pred_check_branch
          %594 = sbr.rel (%p592) target = $region44
        $region43: #{tpu_custom_call.1} parent=35 // pred_region
          %s595 = smul.u32 %s25, 64
          %s596 = scalar_lea.vmem [#allocation3], %s595
          %v597 = vld [vmem:[%s596] sm:$0xff]
          %v598 = vld [vmem:[%s596 + $0x8] sm:$0xff]
          %v599 = vld [vmem:[%s596 + $0x10] sm:$0xff]
          %v600 = vld [vmem:[%s596 + $0x18] sm:$0xff]
          %v601 = vld [vmem:[%s596 + $0x20] sm:$0xff]
          %v602 = vld [vmem:[%s596 + $0x28] sm:$0xff]
          %v603 = vld [vmem:[%s596 + $0x30] sm:$0xff]
          %v604 = vld [vmem:[%s596 + $0x38] sm:$0xff]
          %v605 = vmin.f32 %v597, %v555
          %v606 = vmin.f32 %v598, %v556
          %v607 = vmin.f32 %v599, %v557
          %v608 = vmin.f32 %v600, %v558
          %v609 = vmin.f32 %v601, %v559
          %v610 = vmin.f32 %v602, %v560
          %v611 = vmin.f32 %v603, %v561
          %v612 = vmin.f32 %v604, %v562
          %613 = vst [vmem:[%s596] sm:$0xff] %v605
          %614 = vst [vmem:[%s596 + $0x8] sm:$0xff] %v606
          %615 = vst [vmem:[%s596 + $0x10] sm:$0xff] %v607
          %616 = vst [vmem:[%s596 + $0x18] sm:$0xff] %v608
          %617 = vst [vmem:[%s596 + $0x20] sm:$0xff] %v609
          %618 = vst [vmem:[%s596 + $0x28] sm:$0xff] %v610
          %619 = vst [vmem:[%s596 + $0x30] sm:$0xff] %v611
          %620 = vst [vmem:[%s596 + $0x38] sm:$0xff] %v612
        $region44: #{tpu_custom_call.1} parent=35 // pred_fallthru
          _
        %p621 = scmp.eq.s32.totalorder %s25, 0
        // Predicated region
        $region45: #{tpu_custom_call.1} parent=35 // pred_check
          %p622 = pneg %p621
        $region46: #{tpu_custom_call.1} parent=35 // pred_check_branch
          %624 = sbr.rel (%p622) target = $region48
        $region47: #{tpu_custom_call.1} parent=35 // pred_region
          %625 = vst [vmem:[#allocation2] sm:$0xff] %v555
          %626 = vst [vmem:[#allocation2 + $0x8] sm:$0xff] %v556
          %627 = vst [vmem:[#allocation2 + $0x10] sm:$0xff] %v557
          %628 = vst [vmem:[#allocation2 + $0x18] sm:$0xff] %v558
          %629 = vst [vmem:[#allocation2 + $0x20] sm:$0xff] %v559
          %630 = vst [vmem:[#allocation2 + $0x28] sm:$0xff] %v560
          %631 = vst [vmem:[#allocation2 + $0x30] sm:$0xff] %v561
          %632 = vst [vmem:[#allocation2 + $0x38] sm:$0xff] %v562
        $region48: #{tpu_custom_call.1} parent=35 // pred_fallthru
          _
        %p633 = scmp.ne.s32.totalorder %s25, 0
        // Predicated region
        $region49: #{tpu_custom_call.1} parent=35 // pred_check
          %p634 = pneg %p633
        $region50: #{tpu_custom_call.1} parent=35 // pred_check_branch
          %636 = sbr.rel (%p634) target = $region52
        $region51: #{tpu_custom_call.1} parent=35 // pred_region
          %v637 = vld [vmem:[#allocation2] sm:$0xff]
          %v638 = vld [vmem:[#allocation2 + $0x8] sm:$0xff]
          %v639 = vld [vmem:[#allocation2 + $0x10] sm:$0xff]
          %v640 = vld [vmem:[#allocation2 + $0x18] sm:$0xff]
          %v641 = vld [vmem:[#allocation2 + $0x20] sm:$0xff]
          %v642 = vld [vmem:[#allocation2 + $0x28] sm:$0xff]
          %v643 = vld [vmem:[#allocation2 + $0x30] sm:$0xff]
          %v644 = vld [vmem:[#allocation2 + $0x38] sm:$0xff]
          %v645 = vmin.f32 %v637, %v555
          %v646 = vmin.f32 %v638, %v556
          %v647 = vmin.f32 %v639, %v557
          %v648 = vmin.f32 %v640, %v558
          %v649 = vmin.f32 %v641, %v559
          %v650 = vmin.f32 %v642, %v560
          %v651 = vmin.f32 %v643, %v561
          %v652 = vmin.f32 %v644, %v562
          %653 = vst [vmem:[#allocation2] sm:$0xff] %v645
          %654 = vst [vmem:[#allocation2 + $0x8] sm:$0xff] %v646
          %655 = vst [vmem:[#allocation2 + $0x10] sm:$0xff] %v647
          %656 = vst [vmem:[#allocation2 + $0x18] sm:$0xff] %v648
          %657 = vst [vmem:[#allocation2 + $0x20] sm:$0xff] %v649
          %658 = vst [vmem:[#allocation2 + $0x28] sm:$0xff] %v650
          %659 = vst [vmem:[#allocation2 + $0x30] sm:$0xff] %v651
          %660 = vst [vmem:[#allocation2 + $0x38] sm:$0xff] %v652
        $region52: #{tpu_custom_call.1} parent=35 // pred_fallthru
          _
        // Predicated region
        $region53: #{tpu_custom_call.1} parent=35 // pred_check
          %p661 = pneg %p621
        $region54: #{tpu_custom_call.1} parent=35 // pred_check_branch
          %663 = sbr.rel (%p661) target = $region56
        $region55: #{tpu_custom_call.1} parent=35 // pred_region
          %v664 = vld [vmem:[#allocation2] sm:$0xff]
          %v665 = vld [vmem:[#allocation2 + $0x8] sm:$0xff]
          %v666 = vld [vmem:[#allocation2 + $0x10] sm:$0xff]
          %v667 = vld [vmem:[#allocation2 + $0x18] sm:$0xff]
          %v668 = vld [vmem:[#allocation2 + $0x20] sm:$0xff]
          %v669 = vld [vmem:[#allocation2 + $0x28] sm:$0xff]
          %v670 = vld [vmem:[#allocation2 + $0x30] sm:$0xff]
          %v671 = vld [vmem:[#allocation2 + $0x38] sm:$0xff]
          %672 = vmin.xlane.f32.xlu0 %v664
          %v673 = vpop.xlane.xlu0 %672
          %674 = vmin.xlane.f32.xlu0 %v665
          %v675 = vpop.xlane.xlu0 %674
          %676 = vmin.xlane.f32.xlu0 %v666
          %v677 = vpop.xlane.xlu0 %676
          %678 = vmin.xlane.f32.xlu0 %v667
          %v679 = vpop.xlane.xlu0 %678
          %680 = vmin.xlane.f32.xlu0 %v668
          %v681 = vpop.xlane.xlu0 %680
          %682 = vmin.xlane.f32.xlu0 %v669
          %v683 = vpop.xlane.xlu0 %682
          %684 = vmin.xlane.f32.xlu0 %v670
          %v685 = vpop.xlane.xlu0 %684
          %686 = vmin.xlane.f32.xlu0 %v671
          %v687 = vpop.xlane.xlu0 %686
          %v688 = vlaneseq
          %v689 = vshrl.u32 %v688, 7
          %v690 = vadd.s32 %v689, 8
          %v691 = vadd.s32 %v689, 16
          %v692 = vadd.s32 %v689, 24
          %v693 = vadd.s32 %v689, 32
          %v694 = vadd.s32 %v689, 40
          %v695 = vadd.s32 %v689, 48
          %v696 = vadd.s32 %v689, 56
          %s697 = smul.u32 %s24, 64
          %v698 = vstv %s697
          %v699 = vadd.s32 %v689, %v698
          %v700 = vadd.s32 %v690, %v698
          %v701 = vadd.s32 %v691, %v698
          %v702 = vadd.s32 %v692, %v698
          %v703 = vadd.s32 %v693, %v698
          %v704 = vadd.s32 %v694, %v698
          %v705 = vadd.s32 %v695, %v698
          %v706 = vadd.s32 %v696, %v698
          %vm707 = vcmp.lt.s32.totalorder %v699, 64
          %vm708 = vcmp.lt.s32.totalorder %v700, 64
          %vm709 = vcmp.lt.s32.totalorder %v701, 64
          %vm710 = vcmp.lt.s32.totalorder %v702, 64
          %vm711 = vcmp.lt.s32.totalorder %v703, 64
          %vm712 = vcmp.lt.s32.totalorder %v704, 64
          %vm713 = vcmp.lt.s32.totalorder %v705, 64
          %vm714 = vcmp.lt.s32.totalorder %v706, 64
          %v715 = vsel %vm707, %v673, -1e+30
          %v716 = vsel %vm708, %v675, -1e+30
          %v717 = vsel %vm709, %v677, -1e+30
          %v718 = vsel %vm710, %v679, -1e+30
          %v719 = vsel %vm711, %v681, -1e+30
          %v720 = vsel %vm712, %v683, -1e+30
          %v721 = vsel %vm713, %v685, -1e+30
          %v722 = vsel %vm714, %v687, -1e+30
          %v723 = vmax.f32 %v715, %v719
          %v724 = vmax.f32 %v716, %v720
          %v725 = vmax.f32 %v717, %v721
          %v726 = vmax.f32 %v718, %v722
          %v727 = vmax.f32 %v723, %v724
          %v728 = vmax.f32 %v725, %v726
          %v729 = vmax.f32 %v727, %v728
          %v730 = vrot.slane %v729, 4
          %v731 = vmax.f32 %v729, %v730
          %v732 = vrot.slane %v731, 2
          %v733 = vmax.f32 %v731, %v732
          %v734 = vrot.slane %v733, 1
          %v735 = vmax.f32 %v733, %v734
          %v736 = vld [vmem:[#allocation4] sm:$0x1]
          %s737 = scalar_select %p563, 1, 0
          %v738 = vstv %s737
          %vm739 = vcmp.eq.s32.totalorder %v738, 1
          %v740 = vsel %vm739, -1e+30, %v736
          %v741 = vmax.f32 %v740, %v735
          %vm742 = vcmask 0
          %743 = vst.msk [vmem:[#allocation4] sm:$0x1] %vm742, %v741
        $region56: #{tpu_custom_call.1} parent=35 // pred_fallthru
          _
        %p744 = pnand %p563, %p621
        %p745 = pneg %p744
        // Predicated region
        $region57: #{tpu_custom_call.1} parent=35 // pred_check
          _
        $region58: #{tpu_custom_call.1} parent=35 // pred_check_branch
          %747 = sbr.rel (%p744) target = $region60
        $region59: #{tpu_custom_call.1} parent=35 // pred_region
          %v748 = vld [vmem:[#allocation3] sm:$0xff]
          %v749 = vld [vmem:[#allocation3 + $0x8] sm:$0xff]
          %v750 = vld [vmem:[#allocation3 + $0x10] sm:$0xff]
          %v751 = vld [vmem:[#allocation3 + $0x18] sm:$0xff]
          %v752 = vld [vmem:[#allocation3 + $0x20] sm:$0xff]
          %v753 = vld [vmem:[#allocation3 + $0x28] sm:$0xff]
          %v754 = vld [vmem:[#allocation3 + $0x30] sm:$0xff]
          %v755 = vld [vmem:[#allocation3 + $0x38] sm:$0xff]
          %v756 = vmin.f32 %v748, %v752
          %v757 = vmin.f32 %v749, %v753
          %v758 = vmin.f32 %v750, %v754
          %v759 = vmin.f32 %v751, %v755
          %v760 = vmin.f32 %v756, %v757
          %v761 = vmin.f32 %v758, %v759
          %v762 = vmin.f32 %v760, %v761
          %v763 = vrot.slane %v762, 4
          %v764 = vmin.f32 %v762, %v763
          %v765 = vrot.slane %v764, 2
          %v766 = vmin.f32 %v764, %v765
          %v767 = vrot.slane %v766, 1
          %v768 = vmin.f32 %v766, %v767
          %769 = vmax.xlane.f32.xlu0 %v768
          %v770 = vpop.xlane.xlu0 %769
          %v771 = vmax.f32 %v770, -1e+30
          %v772 = vld [vmem:[#allocation4] sm:$0x1]
          %v773 = vadd.f32 %v771, %v772
          %v774 = vmul.f32 %v773, 0.5
          %776 = vset.pattern.permute.xlu0 0
          %777 = vperm.xlu0 %776, %v774
          %v778 = vpop.permute.xlu0 %777
          %v780 = vlaneseq
          %v781 = vshrl.u32 %v780, 7
          %v782 = vsub.s32 0, %v781
          %v783 = vrot.slane %v778, %v782
          %784 = vst [vmem:[%s285] sm:$0x1] %v783
        $region60: #{tpu_custom_call.1} parent=35 // pred_fallthru
          _
        %s785 = sand.u32 %s157, 1
        %s786 = scalar_lea.sflag [#allocation6], %s785
        %s787 = sand.u32 %s157, 1
        %s788 = scalar_lea.vmem [#allocation5], %s787
        // Predicated region
        $region61: #{tpu_custom_call.1} parent=35 // pred_check
          %p789 = pneg %p167
        $region62: #{tpu_custom_call.1} parent=35 // pred_check_branch
          %791 = sbr.rel (%p789) target = $region64
        $region63: #{tpu_custom_call.1} parent=35 // pred_region
          %s793 = ssub.s32 16, 16
          %794 = vsyncadd %s786, %s793
          %s795 = smul.addr %s23, 16
          %s796 = scalar_lea.hbm %s4, %s795
          %s798 = sshll.u32 %s788, 4
          %s799 = int_to_ptr.vmem [resolvable:$true] %s798
          %801 = dma.vmem_to_hbm [thread:$0]  %s799, 16, %s796, %s786
        $region64: #{tpu_custom_call.1} parent=35 // pred_fallthru
          _
      $region36: #{tpu_custom_call.1} parent=5 // pred_fallthru
        _
      %p802 = scmp.le.s32.totalorder 2, %s13
      // Predicated region
      $region65: #{tpu_custom_call.1} parent=5 // pred_check
        %p803 = pneg %p802
      $region66: #{tpu_custom_call.1} parent=5 // pred_check_branch
        %805 = sbr.rel (%p803) target = $region68
      $region67: #{tpu_custom_call.1} parent=5 // pred_region
        %s806 = ssub.s32 %s13, 2
        // Predicated region
        $region69: #{tpu_custom_call.1} parent=67 // pred_check
          %p807 = pneg %p173
        $region70: #{tpu_custom_call.1} parent=67 // pred_check_branch
          %809 = sbr.rel (%p807) target = $region72
        $region71: #{tpu_custom_call.1} parent=67 // pred_region
          %s810 = sand.u32 %s158, 1
          %s811 = scalar_lea.sflag [#allocation6], %s810
          %s812 = sand.u32 %s158, 1
          %s813 = scalar_lea.vmem [#allocation5], %s812
          %814 = dma.done %s811, 16
        $region72: #{tpu_custom_call.1} parent=67 // pred_fallthru
          _
      $region68: #{tpu_custom_call.1} parent=5 // pred_fallthru
        _
    $region6: #{tpu_custom_call.1} parent=1 // loop_footer
      %s17 = sadd.s32 1, %s13
    $region7: #{tpu_custom_call.1} parent=1 // loop_footer_branch
      %12 = sbr.rel target = $region3
    $region8: #{tpu_custom_call.1} parent=1 // loop_exit
      _
    %815 = vsyncpa [#allocation6], 1
    %s816 = scalar_lea.sflag [#allocation6], 1
    %817 = vsyncpa %s816, 1

</llo_original>
